<compile_context>
chip_gen: v7x
topology: tpu7x:2x2x1
jax: 0.10.0
libtpu: 0.0.40
codegen_flags: <defaults>
</compile_context>

<pallas_src>
import math
from functools import partial

import jax
import jax.numpy as jnp
from jax.experimental import pallas as pl
from jax.experimental.pallas import tpu as pltpu

_NBUF = 8  # in-flight row DMAs per grid step (power of two)


def _round_up(x: int, m: int) -> int:
    return (x + m - 1) // m * m


def _voc_embedding_kernel(coe, nbuf, ids_ref, w_hbm, out_ref, gbuf, sems):
    """Gather one tile of embedding rows from HBM and scale by sqrt(dim).

    ids_ref: SMEM (n_tok_padded,) int32  -- scalar-prefetched flattened token ids
    w_hbm:   HBM  (voc, dim_pad) f32     -- full table, rows fetched on demand
    out_ref: VMEM (tile, dim_pad) f32    -- output block for this grid step
    gbuf:    VMEM (tile, dim_pad) f32    -- gather landing buffer (scratch)
    sems:    DMA semaphores (nbuf,)
    """
    tile = gbuf.shape[0]
    voc = w_hbm.shape[0]
    t0 = pl.program_id(0) * tile

    def row_of(t):
        r = ids_ref[t0 + t]
        # Clamp like jnp.take's default so OOB ids cannot fault the DMA.
        return jnp.maximum(jnp.minimum(r, voc - 1), 0)

    def start(t):
        pltpu.make_async_copy(
            w_hbm.at[pl.ds(row_of(t), 1)],
            gbuf.at[pl.ds(t, 1)],
            sems.at[t & (nbuf - 1)],
        ).start()

    def wait_for(t):
        pltpu.make_async_copy(
            w_hbm.at[pl.ds(0, 1)],          # shape-only descriptor for the wait
            gbuf.at[pl.ds(t, 1)],
            sems.at[t & (nbuf - 1)],
        ).wait()

    nprime = min(nbuf, tile)

    # Prime the row-DMA ring (small static unroll).
    for t in range(nprime):
        start(t)

    # Steady state: retire row t, issue row t + nprime into the freed slot.
    @pl.loop(0, tile - nprime)
    def _(t):
        wait_for(t)
        start(t + nprime)

    # Drain the last nprime copies.
    @pl.loop(tile - nprime, tile)
    def _(t):
        wait_for(t)

    # Scale and write the lane-dense output block.
    out_ref[...] = gbuf[...] * coe


def voc_embedding(ids: jax.Array, weight: jax.Array,
                  *, tile_tokens: int = 256, nbuf: int = _NBUF) -> jax.Array:
    """ids: (B, S) int32; weight: (voc, dim) float32 -> (B, S, dim) float32."""
    assert nbuf & (nbuf - 1) == 0, "nbuf must be a power of two"
    B, S = ids.shape
    voc, dim = weight.shape
    coe = math.sqrt(dim)  # scale uses the true embedding dim, not the padded one

    # Lane-dense output: pad the embedding dim to a multiple of 128.
    dim_pad = _round_up(dim, 128)
    if dim_pad != dim:
        weight = jnp.pad(weight, ((0, 0), (0, dim_pad - dim)))

    # Flatten (B, S) into one token axis and pad to a whole number of tiles.
    n_tok = B * S
    tile = min(tile_tokens, _round_up(n_tok, 8))     # sublane-aligned tile
    n_pad = _round_up(n_tok, tile)
    ids_flat = ids.reshape(-1).astype(jnp.int32)
    if n_pad != n_tok:
        ids_flat = jnp.pad(ids_flat, (0, n_pad - n_tok))  # pad ids -> row 0

    kernel = partial(_voc_embedding_kernel, coe, nbuf)

    out = pl.pallas_call(
        kernel,
        out_shape=jax.ShapeDtypeStruct((n_pad, dim_pad), jnp.float32),
        grid_spec=pltpu.PrefetchScalarGridSpec(
            num_scalar_prefetch=1,                       # ids -> SMEM
            grid=(n_pad // tile,),
            in_specs=[pl.BlockSpec(memory_space=pl.ANY)],  # table stays in HBM
            out_specs=pl.BlockSpec((tile, dim_pad), lambda i, ids: (i, 0)),
            scratch_shapes=[
                pltpu.VMEM((tile, dim_pad), jnp.float32),
                pltpu.SemaphoreType.DMA((nbuf,)),
            ],
        ),
        compiler_params=pltpu.CompilerParams(
            dimension_semantics=("parallel",),           # shards across TCs on v7x
        ),
    )(ids_flat, weight)

    return out[:n_tok, :dim].reshape(B, S, dim)


if __name__ == "__main__":
    # TODO(synk): padding_idx handling (zeroed row) is an init-time detail of
    # nn.Embedding; forward semantics are identical, so it is omitted here.

    # --- primary test: single grid step, dim already lane-aligned ---
    VOC_SIZE, DIM, B, S = 64, 128, 2, 16
    key = jax.random.PRNGKey(0)
    k_w, k_ids, k_w2, k_ids2 = jax.random.split(key, 4)

    weight = jax.random.normal(k_w, (VOC_SIZE, DIM), dtype=jnp.float32)
    ids = jax.random.randint(k_ids, (B, S), 0, VOC_SIZE, dtype=jnp.int32)

    out = jax.block_until_ready(voc_embedding(ids, weight))
    ref = jnp.take(weight, ids, axis=0) * math.sqrt(DIM)
    assert out.shape == (B, S, DIM)
    assert jnp.allclose(out, ref, atol=1e-5, rtol=1e-5)

    # --- secondary test: multi-step grid, token padding, dim padding ---
    VOC2, DIM2, B2, S2 = 1000, 96, 3, 100
    weight2 = jax.random.normal(k_w2, (VOC2, DIM2), dtype=jnp.float32)
    ids2 = jax.random.randint(k_ids2, (B2, S2), 0, VOC2, dtype=jnp.int32)

    out2 = jax.block_until_ready(voc_embedding(ids2, weight2))
    ref2 = jnp.take(weight2, ids2, axis=0) * math.sqrt(DIM2)
    assert out2.shape == (B2, S2, DIM2)
    assert jnp.allclose(out2, ref2, atol=1e-5, rtol=1e-5)

    print("KERNEL_OK")
</pallas_src>

<mosaic_0001>
module attributes {stable_mosaic.version = 11 : i64} {
  func.func @_voc_embedding_kernel(%arg0: i32, %arg1: memref<32xi32, #tpu.memory_space<smem>>, %arg2: memref<64x128xf32, #tpu.memory_space<any>>, %arg3: memref<32x128xf32, #tpu.memory_space<vmem>>, %arg4: memref<32x128xf32, #tpu.memory_space<vmem>>, %arg5: memref<8x!tpu.dma_semaphore, #tpu.memory_space<semaphore_mem>>) attributes {dimension_semantics = [#tpu.dimension_semantics<parallel>], iteration_bounds = array<i64: 1>, scalar_prefetch = 1 : i64, scratch_operands = 2 : i64, tpu.core_type = #tpu.core_type<tc>, window_params = [{}, {transform_indices = @transform_1, window_bounds = array<i64: 32, 128>}]} {
    %c32_i32 = arith.constant 32 : i32
    %0 = arith.muli %arg0, %c32_i32 : i32
    %c0_i32 = arith.constant 0 : i32
    %1 = arith.addi %0, %c0_i32 : i32
    %2 = arith.index_cast %1 : i32 to index
    %3 = memref.load %arg1[%2] : memref<32xi32, #tpu.memory_space<smem>>
    %c63_i32 = arith.constant 63 : i32
    %4 = arith.minsi %3, %c63_i32 : i32
    %c0_i32_0 = arith.constant 0 : i32
    %5 = arith.maxsi %4, %c0_i32_0 : i32
    %c0_i32_1 = arith.constant 0 : i32
    %c0_i32_2 = arith.constant 0 : i32
    %6 = tpu.memref_slice %arg2[%5, %c0_i32_2] : memref<64x128xf32, #tpu.memory_space<any>> -> memref<1x128xf32, #tpu.memory_space<any>>
    %c0_i32_3 = arith.constant 0 : i32
    %c0_i32_4 = arith.constant 0 : i32
    %7 = tpu.memref_slice %arg4[%c0_i32_3, %c0_i32_4] : memref<32x128xf32, #tpu.memory_space<vmem>> -> memref<1x128xf32, #tpu.memory_space<vmem>>
    %8 = tpu.memref_slice %arg5[%c0_i32_1] : memref<8x!tpu.dma_semaphore, #tpu.memory_space<semaphore_mem>> -> memref<1x!tpu.dma_semaphore, #tpu.memory_space<semaphore_mem>>
    %9 = tpu.memref_squeeze %8 : memref<1x!tpu.dma_semaphore, #tpu.memory_space<semaphore_mem>> -> memref<!tpu.dma_semaphore, #tpu.memory_space<semaphore_mem>>
    tpu.enqueue_dma source(%6 : memref<1x128xf32, #tpu.memory_space<any>>) target(%7 : memref<1x128xf32, #tpu.memory_space<vmem>>) target_semaphore(%9 : memref<!tpu.dma_semaphore, #tpu.memory_space<semaphore_mem>>)
    %c1_i32 = arith.constant 1 : i32
    %10 = arith.addi %0, %c1_i32 : i32
    %11 = arith.index_cast %10 : i32 to index
    %12 = memref.load %arg1[%11] : memref<32xi32, #tpu.memory_space<smem>>
    %c63_i32_5 = arith.constant 63 : i32
    %13 = arith.minsi %12, %c63_i32_5 : i32
    %c0_i32_6 = arith.constant 0 : i32
    %14 = arith.maxsi %13, %c0_i32_6 : i32
    %c1_i32_7 = arith.constant 1 : i32
    %c0_i32_8 = arith.constant 0 : i32
    %15 = tpu.memref_slice %arg2[%14, %c0_i32_8] : memref<64x128xf32, #tpu.memory_space<any>> -> memref<1x128xf32, #tpu.memory_space<any>>
    %c1_i32_9 = arith.constant 1 : i32
    %c0_i32_10 = arith.constant 0 : i32
    %16 = tpu.memref_slice %arg4[%c1_i32_9, %c0_i32_10] : memref<32x128xf32, #tpu.memory_space<vmem>> -> memref<1x128xf32, #tpu.memory_space<vmem>>
    %17 = tpu.memref_slice %arg5[%c1_i32_7] : memref<8x!tpu.dma_semaphore, #tpu.memory_space<semaphore_mem>> -> memref<1x!tpu.dma_semaphore, #tpu.memory_space<semaphore_mem>>
    %18 = tpu.memref_squeeze %17 : memref<1x!tpu.dma_semaphore, #tpu.memory_space<semaphore_mem>> -> memref<!tpu.dma_semaphore, #tpu.memory_space<semaphore_mem>>
    tpu.enqueue_dma source(%15 : memref<1x128xf32, #tpu.memory_space<any>>) target(%16 : memref<1x128xf32, #tpu.memory_space<vmem>>) target_semaphore(%18 : memref<!tpu.dma_semaphore, #tpu.memory_space<semaphore_mem>>)
    %c2_i32 = arith.constant 2 : i32
    %19 = arith.addi %0, %c2_i32 : i32
    %20 = arith.index_cast %19 : i32 to index
    %21 = memref.load %arg1[%20] : memref<32xi32, #tpu.memory_space<smem>>
    %c63_i32_11 = arith.constant 63 : i32
    %22 = arith.minsi %21, %c63_i32_11 : i32
    %c0_i32_12 = arith.constant 0 : i32
    %23 = arith.maxsi %22, %c0_i32_12 : i32
    %c2_i32_13 = arith.constant 2 : i32
    %c0_i32_14 = arith.constant 0 : i32
    %24 = tpu.memref_slice %arg2[%23, %c0_i32_14] : memref<64x128xf32, #tpu.memory_space<any>> -> memref<1x128xf32, #tpu.memory_space<any>>
    %c2_i32_15 = arith.constant 2 : i32
    %c0_i32_16 = arith.constant 0 : i32
    %25 = tpu.memref_slice %arg4[%c2_i32_15, %c0_i32_16] : memref<32x128xf32, #tpu.memory_space<vmem>> -> memref<1x128xf32, #tpu.memory_space<vmem>>
    %26 = tpu.memref_slice %arg5[%c2_i32_13] : memref<8x!tpu.dma_semaphore, #tpu.memory_space<semaphore_mem>> -> memref<1x!tpu.dma_semaphore, #tpu.memory_space<semaphore_mem>>
    %27 = tpu.memref_squeeze %26 : memref<1x!tpu.dma_semaphore, #tpu.memory_space<semaphore_mem>> -> memref<!tpu.dma_semaphore, #tpu.memory_space<semaphore_mem>>
    tpu.enqueue_dma source(%24 : memref<1x128xf32, #tpu.memory_space<any>>) target(%25 : memref<1x128xf32, #tpu.memory_space<vmem>>) target_semaphore(%27 : memref<!tpu.dma_semaphore, #tpu.memory_space<semaphore_mem>>)
    %c3_i32 = arith.constant 3 : i32
    %28 = arith.addi %0, %c3_i32 : i32
    %29 = arith.index_cast %28 : i32 to index
    %30 = memref.load %arg1[%29] : memref<32xi32, #tpu.memory_space<smem>>
    %c63_i32_17 = arith.constant 63 : i32
    %31 = arith.minsi %30, %c63_i32_17 : i32
    %c0_i32_18 = arith.constant 0 : i32
    %32 = arith.maxsi %31, %c0_i32_18 : i32
    %c3_i32_19 = arith.constant 3 : i32
    %c0_i32_20 = arith.constant 0 : i32
    %33 = tpu.memref_slice %arg2[%32, %c0_i32_20] : memref<64x128xf32, #tpu.memory_space<any>> -> memref<1x128xf32, #tpu.memory_space<any>>
    %c3_i32_21 = arith.constant 3 : i32
    %c0_i32_22 = arith.constant 0 : i32
    %34 = tpu.memref_slice %arg4[%c3_i32_21, %c0_i32_22] : memref<32x128xf32, #tpu.memory_space<vmem>> -> memref<1x128xf32, #tpu.memory_space<vmem>>
    %35 = tpu.memref_slice %arg5[%c3_i32_19] : memref<8x!tpu.dma_semaphore, #tpu.memory_space<semaphore_mem>> -> memref<1x!tpu.dma_semaphore, #tpu.memory_space<semaphore_mem>>
    %36 = tpu.memref_squeeze %35 : memref<1x!tpu.dma_semaphore, #tpu.memory_space<semaphore_mem>> -> memref<!tpu.dma_semaphore, #tpu.memory_space<semaphore_mem>>
    tpu.enqueue_dma source(%33 : memref<1x128xf32, #tpu.memory_space<any>>) target(%34 : memref<1x128xf32, #tpu.memory_space<vmem>>) target_semaphore(%36 : memref<!tpu.dma_semaphore, #tpu.memory_space<semaphore_mem>>)
    %c4_i32 = arith.constant 4 : i32
    %37 = arith.addi %0, %c4_i32 : i32
    %38 = arith.index_cast %37 : i32 to index
    %39 = memref.load %arg1[%38] : memref<32xi32, #tpu.memory_space<smem>>
    %c63_i32_23 = arith.constant 63 : i32
    %40 = arith.minsi %39, %c63_i32_23 : i32
    %c0_i32_24 = arith.constant 0 : i32
    %41 = arith.maxsi %40, %c0_i32_24 : i32
    %c4_i32_25 = arith.constant 4 : i32
    %c0_i32_26 = arith.constant 0 : i32
    %42 = tpu.memref_slice %arg2[%41, %c0_i32_26] : memref<64x128xf32, #tpu.memory_space<any>> -> memref<1x128xf32, #tpu.memory_space<any>>
    %c4_i32_27 = arith.constant 4 : i32
    %c0_i32_28 = arith.constant 0 : i32
    %43 = tpu.memref_slice %arg4[%c4_i32_27, %c0_i32_28] : memref<32x128xf32, #tpu.memory_space<vmem>> -> memref<1x128xf32, #tpu.memory_space<vmem>>
    %44 = tpu.memref_slice %arg5[%c4_i32_25] : memref<8x!tpu.dma_semaphore, #tpu.memory_space<semaphore_mem>> -> memref<1x!tpu.dma_semaphore, #tpu.memory_space<semaphore_mem>>
    %45 = tpu.memref_squeeze %44 : memref<1x!tpu.dma_semaphore, #tpu.memory_space<semaphore_mem>> -> memref<!tpu.dma_semaphore, #tpu.memory_space<semaphore_mem>>
    tpu.enqueue_dma source(%42 : memref<1x128xf32, #tpu.memory_space<any>>) target(%43 : memref<1x128xf32, #tpu.memory_space<vmem>>) target_semaphore(%45 : memref<!tpu.dma_semaphore, #tpu.memory_space<semaphore_mem>>)
    %c5_i32 = arith.constant 5 : i32
    %46 = arith.addi %0, %c5_i32 : i32
    %47 = arith.index_cast %46 : i32 to index
    %48 = memref.load %arg1[%47] : memref<32xi32, #tpu.memory_space<smem>>
    %c63_i32_29 = arith.constant 63 : i32
    %49 = arith.minsi %48, %c63_i32_29 : i32
    %c0_i32_30 = arith.constant 0 : i32
    %50 = arith.maxsi %49, %c0_i32_30 : i32
    %c5_i32_31 = arith.constant 5 : i32
    %c0_i32_32 = arith.constant 0 : i32
    %51 = tpu.memref_slice %arg2[%50, %c0_i32_32] : memref<64x128xf32, #tpu.memory_space<any>> -> memref<1x128xf32, #tpu.memory_space<any>>
    %c5_i32_33 = arith.constant 5 : i32
    %c0_i32_34 = arith.constant 0 : i32
    %52 = tpu.memref_slice %arg4[%c5_i32_33, %c0_i32_34] : memref<32x128xf32, #tpu.memory_space<vmem>> -> memref<1x128xf32, #tpu.memory_space<vmem>>
    %53 = tpu.memref_slice %arg5[%c5_i32_31] : memref<8x!tpu.dma_semaphore, #tpu.memory_space<semaphore_mem>> -> memref<1x!tpu.dma_semaphore, #tpu.memory_space<semaphore_mem>>
    %54 = tpu.memref_squeeze %53 : memref<1x!tpu.dma_semaphore, #tpu.memory_space<semaphore_mem>> -> memref<!tpu.dma_semaphore, #tpu.memory_space<semaphore_mem>>
    tpu.enqueue_dma source(%51 : memref<1x128xf32, #tpu.memory_space<any>>) target(%52 : memref<1x128xf32, #tpu.memory_space<vmem>>) target_semaphore(%54 : memref<!tpu.dma_semaphore, #tpu.memory_space<semaphore_mem>>)
    %c6_i32 = arith.constant 6 : i32
    %55 = arith.addi %0, %c6_i32 : i32
    %56 = arith.index_cast %55 : i32 to index
    %57 = memref.load %arg1[%56] : memref<32xi32, #tpu.memory_space<smem>>
    %c63_i32_35 = arith.constant 63 : i32
    %58 = arith.minsi %57, %c63_i32_35 : i32
    %c0_i32_36 = arith.constant 0 : i32
    %59 = arith.maxsi %58, %c0_i32_36 : i32
    %c6_i32_37 = arith.constant 6 : i32
    %c0_i32_38 = arith.constant 0 : i32
    %60 = tpu.memref_slice %arg2[%59, %c0_i32_38] : memref<64x128xf32, #tpu.memory_space<any>> -> memref<1x128xf32, #tpu.memory_space<any>>
    %c6_i32_39 = arith.constant 6 : i32
    %c0_i32_40 = arith.constant 0 : i32
    %61 = tpu.memref_slice %arg4[%c6_i32_39, %c0_i32_40] : memref<32x128xf32, #tpu.memory_space<vmem>> -> memref<1x128xf32, #tpu.memory_space<vmem>>
    %62 = tpu.memref_slice %arg5[%c6_i32_37] : memref<8x!tpu.dma_semaphore, #tpu.memory_space<semaphore_mem>> -> memref<1x!tpu.dma_semaphore, #tpu.memory_space<semaphore_mem>>
    %63 = tpu.memref_squeeze %62 : memref<1x!tpu.dma_semaphore, #tpu.memory_space<semaphore_mem>> -> memref<!tpu.dma_semaphore, #tpu.memory_space<semaphore_mem>>
    tpu.enqueue_dma source(%60 : memref<1x128xf32, #tpu.memory_space<any>>) target(%61 : memref<1x128xf32, #tpu.memory_space<vmem>>) target_semaphore(%63 : memref<!tpu.dma_semaphore, #tpu.memory_space<semaphore_mem>>)
    %c7_i32 = arith.constant 7 : i32
    %64 = arith.addi %0, %c7_i32 : i32
    %65 = arith.index_cast %64 : i32 to index
    %66 = memref.load %arg1[%65] : memref<32xi32, #tpu.memory_space<smem>>
    %c63_i32_41 = arith.constant 63 : i32
    %67 = arith.minsi %66, %c63_i32_41 : i32
    %c0_i32_42 = arith.constant 0 : i32
    %68 = arith.maxsi %67, %c0_i32_42 : i32
    %c7_i32_43 = arith.constant 7 : i32
    %c0_i32_44 = arith.constant 0 : i32
    %69 = tpu.memref_slice %arg2[%68, %c0_i32_44] : memref<64x128xf32, #tpu.memory_space<any>> -> memref<1x128xf32, #tpu.memory_space<any>>
    %c7_i32_45 = arith.constant 7 : i32
    %c0_i32_46 = arith.constant 0 : i32
    %70 = tpu.memref_slice %arg4[%c7_i32_45, %c0_i32_46] : memref<32x128xf32, #tpu.memory_space<vmem>> -> memref<1x128xf32, #tpu.memory_space<vmem>>
    %71 = tpu.memref_slice %arg5[%c7_i32_43] : memref<8x!tpu.dma_semaphore, #tpu.memory_space<semaphore_mem>> -> memref<1x!tpu.dma_semaphore, #tpu.memory_space<semaphore_mem>>
    %72 = tpu.memref_squeeze %71 : memref<1x!tpu.dma_semaphore, #tpu.memory_space<semaphore_mem>> -> memref<!tpu.dma_semaphore, #tpu.memory_space<semaphore_mem>>
    tpu.enqueue_dma source(%69 : memref<1x128xf32, #tpu.memory_space<any>>) target(%70 : memref<1x128xf32, #tpu.memory_space<vmem>>) target_semaphore(%72 : memref<!tpu.dma_semaphore, #tpu.memory_space<semaphore_mem>>)
    %c0_i32_47 = arith.constant 0 : i32
    %c24_i32 = arith.constant 24 : i32
    %73 = arith.addi %c0_i32_47, %c24_i32 : i32
    %c1_i32_48 = arith.constant 1 : i32
    scf.for %arg6 = %c0_i32_47 to %73 step %c1_i32_48  : i32 {
      %c1_i32_56 = arith.constant 1 : i32
      %79 = arith.muli %arg6, %c1_i32_56 : i32
      %c0_i32_57 = arith.constant 0 : i32
      %80 = arith.addi %c0_i32_57, %79 : i32
      %c7_i32_58 = arith.constant 7 : i32
      %81 = arith.andi %80, %c7_i32_58 : i32
      %c0_i32_59 = arith.constant 0 : i32
      %c0_i32_60 = arith.constant 0 : i32
      %82 = tpu.memref_slice %arg2[%c0_i32_59, %c0_i32_60] : memref<64x128xf32, #tpu.memory_space<any>> -> memref<1x128xf32, #tpu.memory_space<any>>
      %c0_i32_61 = arith.constant 0 : i32
      %83 = tpu.memref_slice %arg4[%80, %c0_i32_61] : memref<32x128xf32, #tpu.memory_space<vmem>> -> memref<1x128xf32, #tpu.memory_space<vmem>>
      %84 = tpu.memref_slice %arg5[%81] : memref<8x!tpu.dma_semaphore, #tpu.memory_space<semaphore_mem>> -> memref<1x!tpu.dma_semaphore, #tpu.memory_space<semaphore_mem>>
      %85 = tpu.memref_squeeze %84 : memref<1x!tpu.dma_semaphore, #tpu.memory_space<semaphore_mem>> -> memref<!tpu.dma_semaphore, #tpu.memory_space<semaphore_mem>>
      tpu.wait_dma2 semaphore(%85 : memref<!tpu.dma_semaphore, #tpu.memory_space<semaphore_mem>>) src(%82 : memref<1x128xf32, #tpu.memory_space<any>>) dst(%83 : memref<1x128xf32, #tpu.memory_space<vmem>>)
      %c8_i32_62 = arith.constant 8 : i32
      %86 = arith.addi %80, %c8_i32_62 : i32
      %87 = arith.addi %0, %86 : i32
      %88 = arith.index_cast %87 : i32 to index
      %89 = memref.load %arg1[%88] : memref<32xi32, #tpu.memory_space<smem>>
      %c63_i32_63 = arith.constant 63 : i32
      %90 = arith.minsi %89, %c63_i32_63 : i32
      %c0_i32_64 = arith.constant 0 : i32
      %91 = arith.maxsi %90, %c0_i32_64 : i32
      %c7_i32_65 = arith.constant 7 : i32
      %92 = arith.andi %86, %c7_i32_65 : i32
      %c0_i32_66 = arith.constant 0 : i32
      %93 = tpu.memref_slice %arg2[%91, %c0_i32_66] : memref<64x128xf32, #tpu.memory_space<any>> -> memref<1x128xf32, #tpu.memory_space<any>>
      %c0_i32_67 = arith.constant 0 : i32
      %94 = tpu.memref_slice %arg4[%86, %c0_i32_67] : memref<32x128xf32, #tpu.memory_space<vmem>> -> memref<1x128xf32, #tpu.memory_space<vmem>>
      %95 = tpu.memref_slice %arg5[%92] : memref<8x!tpu.dma_semaphore, #tpu.memory_space<semaphore_mem>> -> memref<1x!tpu.dma_semaphore, #tpu.memory_space<semaphore_mem>>
      %96 = tpu.memref_squeeze %95 : memref<1x!tpu.dma_semaphore, #tpu.memory_space<semaphore_mem>> -> memref<!tpu.dma_semaphore, #tpu.memory_space<semaphore_mem>>
      tpu.enqueue_dma source(%93 : memref<1x128xf32, #tpu.memory_space<any>>) target(%94 : memref<1x128xf32, #tpu.memory_space<vmem>>) target_semaphore(%96 : memref<!tpu.dma_semaphore, #tpu.memory_space<semaphore_mem>>)
    }
    %c24_i32_49 = arith.constant 24 : i32
    %c0_i32_50 = arith.constant 0 : i32
    %c8_i32 = arith.constant 8 : i32
    %74 = arith.addi %c0_i32_50, %c8_i32 : i32
    %c1_i32_51 = arith.constant 1 : i32
    scf.for %arg6 = %c0_i32_50 to %74 step %c1_i32_51  : i32 {
      %c1_i32_56 = arith.constant 1 : i32
      %79 = arith.muli %arg6, %c1_i32_56 : i32
      %c24_i32_57 = arith.constant 24 : i32
      %80 = arith.addi %c24_i32_57, %79 : i32
      %c7_i32_58 = arith.constant 7 : i32
      %81 = arith.andi %80, %c7_i32_58 : i32
      %c0_i32_59 = arith.constant 0 : i32
      %c0_i32_60 = arith.constant 0 : i32
      %82 = tpu.memref_slice %arg2[%c0_i32_59, %c0_i32_60] : memref<64x128xf32, #tpu.memory_space<any>> -> memref<1x128xf32, #tpu.memory_space<any>>
      %c0_i32_61 = arith.constant 0 : i32
      %83 = tpu.memref_slice %arg4[%80, %c0_i32_61] : memref<32x128xf32, #tpu.memory_space<vmem>> -> memref<1x128xf32, #tpu.memory_space<vmem>>
      %84 = tpu.memref_slice %arg5[%81] : memref<8x!tpu.dma_semaphore, #tpu.memory_space<semaphore_mem>> -> memref<1x!tpu.dma_semaphore, #tpu.memory_space<semaphore_mem>>
      %85 = tpu.memref_squeeze %84 : memref<1x!tpu.dma_semaphore, #tpu.memory_space<semaphore_mem>> -> memref<!tpu.dma_semaphore, #tpu.memory_space<semaphore_mem>>
      tpu.wait_dma2 semaphore(%85 : memref<!tpu.dma_semaphore, #tpu.memory_space<semaphore_mem>>) src(%82 : memref<1x128xf32, #tpu.memory_space<any>>) dst(%83 : memref<1x128xf32, #tpu.memory_space<vmem>>)
    }
    %c8_i32_52 = arith.constant 8 : i32
    %c0 = arith.constant 0 : index
    %c0_53 = arith.constant 0 : index
    %75 = vector.load %arg4[%c0, %c0_53] : memref<32x128xf32, #tpu.memory_space<vmem>>, vector<32x128xf32>
    %cst = arith.constant 11.3137083 : f32
    %76 = vector.broadcast %cst : f32 to vector<32x128xf32>
    %77 = arith.mulf %75, %76 : vector<32x128xf32>
    %c0_54 = arith.constant 0 : index
    %c0_55 = arith.constant 0 : index
    %78 = vector.load %arg3[%c0_54, %c0_55] : memref<32x128xf32, #tpu.memory_space<vmem>>, vector<32x128xf32>
    tpu.vector_store %arg3[%c0_54, %c0_55], %77 {strides = array<i32>} : memref<32x128xf32, #tpu.memory_space<vmem>>, vector<32x128xf32>,
    return
  }
  func.func @transform_1(%arg0: i32, %arg1: memref<32xi32, #tpu.memory_space<smem>>) -> (i32, i32) {
    %c0_i32 = arith.constant 0 : i32
    %c0_i32_0 = arith.constant 0 : i32
    return %arg0, %c0_i32 : i32, i32
  }
}

</mosaic_0001>

<llo_original>
// kernel: tpu_custom_call.1
$region0: #{tpu_custom_call.1}
  #allocation0 [shape = 'u32[]', space=smem, size = 0x4, offset = 0x4, fixed_abs, tag = 'smem constant byte address 0x4 - core index']
  #allocation1 [shape = 'u32[144,128]{1,0:T(1,128)}', space=vmem, size = 0x12000, scoped, tag = 'internal scratch']
  #allocation2 [shape = 'f32[32,128]{1,0:T(8,128)}', space=vmem, size = 0x4000, scoped, tag = 'scratch operand']
  #allocation3 [shape = 's32[8]{0}', space=sflag, size = 0x20, scoped, tag = 'scratch operand']
  #allocation4 [shape = 's32[1]{0}', space=sflag, size = 0x4, scoped, tag = 'scoped memory for tpu_custom_call.1']
  #allocation5 [shape = 'u8[512]{0}', space=smem, size = 0x200, scoped, tag = 'prefetched SMEM operand 0']
  #allocation8 [shape = 's32[]', space=sflag, size = 0x4, offset = 0, fixed_abs, tag = 'sflag constant byte address 0x0 - dummy sync flag']
  #allocation9 [shape = 's32[]', space=sflag, size = 0x4, offset = 0, fixed_abs, tag = 'sflag constant byte address 0x0 - dummy sync flag']
  #allocation10 [shape = 'u32[]', space=smem, size = 0x4, offset = 0x44, fixed_abs, tag = 'smem constant byte address 0x44 - assertion arg 0']
  #allocation11 [shape = 'u32[]', space=smem, size = 0x4, offset = 0x48, fixed_abs, tag = 'smem constant byte address 0x48 - assertion arg 1']
  #allocation12 [shape = 's32[]', space=sflag, size = 0x4, offset = 0, fixed_abs, tag = 'sflag constant byte address 0x0 - dummy sync flag']
  #allocation13 [shape = 's32[]', space=sflag, size = 0x4, offset = 0, fixed_abs, tag = 'sflag constant byte address 0x0 - dummy sync flag']
  #allocation14 [shape = 's32[]', space=sflag, size = 0x4, offset = 0, fixed_abs, tag = 'sflag constant byte address 0x0 - dummy sync flag']
  #allocation15 [shape = 's32[]', space=sflag, size = 0x4, offset = 0, fixed_abs, tag = 'sflag constant byte address 0x0 - dummy sync flag']
  #allocation16 [shape = 's32[]', space=sflag, size = 0x4, offset = 0, fixed_abs, tag = 'sflag constant byte address 0x0 - dummy sync flag']
  #allocation17 [shape = 's32[]', space=sflag, size = 0x4, offset = 0, fixed_abs, tag = 'sflag constant byte address 0x0 - dummy sync flag']
  #allocation18 [shape = 's32[]', space=sflag, size = 0x4, offset = 0, fixed_abs, tag = 'sflag constant byte address 0x0 - dummy sync flag']
  #allocation19 [shape = 's32[]', space=sflag, size = 0x4, offset = 0, fixed_abs, tag = 'sflag constant byte address 0x0 - dummy sync flag']
  #allocation20 [shape = 's32[]', space=sflag, size = 0x4, offset = 0, fixed_abs, tag = 'sflag constant byte address 0x0 - dummy sync flag']
  #allocation21 [shape = 's32[]', space=sflag, size = 0x4, offset = 0, fixed_abs, tag = 'sflag constant byte address 0x0 - dummy sync flag']
  #allocation22 [shape = 's32[]', space=sflag, size = 0x4, offset = 0, fixed_abs, tag = 'sflag constant byte address 0x0 - dummy sync flag']
  #allocation23 [shape = 's32[]', space=sflag, size = 0x4, offset = 0, fixed_abs, tag = 'sflag constant byte address 0x0 - dummy sync flag']
  #allocation24 [shape = 's32[]', space=sflag, size = 0x4, offset = 0, fixed_abs, tag = 'sflag constant byte address 0x0 - dummy sync flag']
  #allocation25 [shape = 's32[]', space=sflag, size = 0x4, offset = 0, fixed_abs, tag = 'sflag constant byte address 0x0 - dummy sync flag']
  #allocation26 [shape = 's32[]', space=sflag, size = 0x4, offset = 0, fixed_abs, tag = 'sflag constant byte address 0x0 - dummy sync flag']
  #allocation27 [shape = 's32[]', space=sflag, size = 0x4, offset = 0, fixed_abs, tag = 'sflag constant byte address 0x0 - dummy sync flag']
  %s0 = inlined_call_operand.hbm [shape: s32[32], index: 0, kind: input, shape index: {}]
  %s1 = inlined_call_operand.hbm [shape: f32[64,128], index: 1, kind: input, shape index: {}]
  %s2 = inlined_call_operand.hbm [shape: f32[32,128], index: 2, kind: output, shape index: {}]
  %s3 = sld [smem:[#allocation0]]
  $region60: #{tpu_custom_call.1} parent=0
    _
  %s5 = ssub.s32 1, %s3
  %s6 = scalar_select 0, %s5, %s3
  %8 = dma.hbm_to_smem %s0, 16, [#allocation5], [#allocation4]
  %9 = dma.done [#allocation4], 16
  %10 = sfence
  $region1: #{tpu_custom_call.1} parent=0
    #allocation6 [shape = 'u8[16384]{0}', space=vmem, size = 0x4000, scoped, tag = 'output window, operand 0, single buffered']
    #allocation7 [shape = 's32[1]{0}', space=sflag, size = 0x4, scoped, tag = 'scoped memory for tpu_custom_call.1']
    %11 = vsyncpa [#allocation7], 0
    %s12 = smul.u32 0, 32
    %s13 = sld [smem:[#allocation5 + %s12]]
    %p14 = scmp.lt.s32.totalorder %s13, 63
    %s15 = scalar_select %p14, %s13, 63
    %p16 = scmp.gt.s32.totalorder %s15, 0
    %s17 = scalar_select %p16, %s15, 0
    %s18 = smul.addr %s17, 16
    %s19 = scalar_lea.hbm %s1, %s18
    // Predicated region
    $region2: #{tpu_custom_call.1} parent=1 // pred_check
      _
    $region3: #{tpu_custom_call.1} parent=1 // pred_check_branch
      %21 = sbr.rel target = $region5
    $region4: #{tpu_custom_call.1} parent=1 // pred_region
      %22 = sst [smem:[#allocation10]] [#allocation9]
      %23 = sst [smem:[#allocation11]] [#allocation8]
    $region5: #{tpu_custom_call.1} parent=1 // pred_fallthru
      _
    %25 = shalt.err (0)
    %s27 = sshll.u32 [#allocation2], 4
    %s28 = int_to_ptr.vmem [resolvable:$true] %s27
    %30 = dma.hbm_to_vmem [thread:$0]  %s19, 16, %s28, [#allocation3]
    %s31 = sadd.s32 %s12, 1
    %s32 = sld [smem:[#allocation5 + %s31]]
    %p33 = scmp.lt.s32.totalorder %s32, 63
    %s34 = scalar_select %p33, %s32, 63
    %p35 = scmp.gt.s32.totalorder %s34, 0
    %s36 = scalar_select %p35, %s34, 0
    %s37 = smul.addr %s36, 16
    %s38 = scalar_lea.hbm %s1, %s37
    %s39 = scalar_lea.vmem [#allocation2], 1
    %s40 = scalar_lea.sflag [#allocation3], 1
    // Predicated region
    $region6: #{tpu_custom_call.1} parent=1 // pred_check
      _
    $region7: #{tpu_custom_call.1} parent=1 // pred_check_branch
      %42 = sbr.rel target = $region9
    $region8: #{tpu_custom_call.1} parent=1 // pred_region
      %43 = sst [smem:[#allocation10]] [#allocation13]
      %44 = sst [smem:[#allocation11]] [#allocation12]
    $region9: #{tpu_custom_call.1} parent=1 // pred_fallthru
      _
    %46 = shalt.err (0)
    %s48 = sshll.u32 %s39, 4
    %s49 = int_to_ptr.vmem [resolvable:$true] %s48
    %51 = dma.hbm_to_vmem [thread:$0]  %s38, 16, %s49, %s40
    %s52 = sadd.s32 %s12, 2
    %s53 = sld [smem:[#allocation5 + %s52]]
    %p54 = scmp.lt.s32.totalorder %s53, 63
    %s55 = scalar_select %p54, %s53, 63
    %p56 = scmp.gt.s32.totalorder %s55, 0
    %s57 = scalar_select %p56, %s55, 0
    %s58 = smul.addr %s57, 16
    %s59 = scalar_lea.hbm %s1, %s58
    %s60 = scalar_lea.vmem [#allocation2], 2
    %s61 = scalar_lea.sflag [#allocation3], 2
    // Predicated region
    $region10: #{tpu_custom_call.1} parent=1 // pred_check
      _
    $region11: #{tpu_custom_call.1} parent=1 // pred_check_branch
      %63 = sbr.rel target = $region13
    $region12: #{tpu_custom_call.1} parent=1 // pred_region
      %64 = sst [smem:[#allocation10]] [#allocation15]
      %65 = sst [smem:[#allocation11]] [#allocation14]
    $region13: #{tpu_custom_call.1} parent=1 // pred_fallthru
      _
    %67 = shalt.err (0)
    %s69 = sshll.u32 %s60, 4
    %s70 = int_to_ptr.vmem [resolvable:$true] %s69
    %72 = dma.hbm_to_vmem [thread:$0]  %s59, 16, %s70, %s61
    %s73 = sadd.s32 %s12, 3
    %s74 = sld [smem:[#allocation5 + %s73]]
    %p75 = scmp.lt.s32.totalorder %s74, 63
    %s76 = scalar_select %p75, %s74, 63
    %p77 = scmp.gt.s32.totalorder %s76, 0
    %s78 = scalar_select %p77, %s76, 0
    %s79 = smul.addr %s78, 16
    %s80 = scalar_lea.hbm %s1, %s79
    %s81 = scalar_lea.vmem [#allocation2], 3
    %s82 = scalar_lea.sflag [#allocation3], 3
    // Predicated region
    $region14: #{tpu_custom_call.1} parent=1 // pred_check
      _
    $region15: #{tpu_custom_call.1} parent=1 // pred_check_branch
      %84 = sbr.rel target = $region17
    $region16: #{tpu_custom_call.1} parent=1 // pred_region
      %85 = sst [smem:[#allocation10]] [#allocation17]
      %86 = sst [smem:[#allocation11]] [#allocation16]
    $region17: #{tpu_custom_call.1} parent=1 // pred_fallthru
      _
    %88 = shalt.err (0)
    %s90 = sshll.u32 %s81, 4
    %s91 = int_to_ptr.vmem [resolvable:$true] %s90
    %93 = dma.hbm_to_vmem [thread:$0]  %s80, 16, %s91, %s82
    %s94 = sadd.s32 %s12, 4
    %s95 = sld [smem:[#allocation5 + %s94]]
    %p96 = scmp.lt.s32.totalorder %s95, 63
    %s97 = scalar_select %p96, %s95, 63
    %p98 = scmp.gt.s32.totalorder %s97, 0
    %s99 = scalar_select %p98, %s97, 0
    %s100 = smul.addr %s99, 16
    %s101 = scalar_lea.hbm %s1, %s100
    %s102 = scalar_lea.vmem [#allocation2], 4
    %s103 = scalar_lea.sflag [#allocation3], 4
    // Predicated region
    $region18: #{tpu_custom_call.1} parent=1 // pred_check
      _
    $region19: #{tpu_custom_call.1} parent=1 // pred_check_branch
      %105 = sbr.rel target = $region21
    $region20: #{tpu_custom_call.1} parent=1 // pred_region
      %106 = sst [smem:[#allocation10]] [#allocation19]
      %107 = sst [smem:[#allocation11]] [#allocation18]
    $region21: #{tpu_custom_call.1} parent=1 // pred_fallthru
      _
    %109 = shalt.err (0)
    %s111 = sshll.u32 %s102, 4
    %s112 = int_to_ptr.vmem [resolvable:$true] %s111
    %114 = dma.hbm_to_vmem [thread:$0]  %s101, 16, %s112, %s103
    %s115 = sadd.s32 %s12, 5
    %s116 = sld [smem:[#allocation5 + %s115]]
    %p117 = scmp.lt.s32.totalorder %s116, 63
    %s118 = scalar_select %p117, %s116, 63
    %p119 = scmp.gt.s32.totalorder %s118, 0
    %s120 = scalar_select %p119, %s118, 0
    %s121 = smul.addr %s120, 16
    %s122 = scalar_lea.hbm %s1, %s121
    %s123 = scalar_lea.vmem [#allocation2], 5
    %s124 = scalar_lea.sflag [#allocation3], 5
    // Predicated region
    $region22: #{tpu_custom_call.1} parent=1 // pred_check
      _
    $region23: #{tpu_custom_call.1} parent=1 // pred_check_branch
      %126 = sbr.rel target = $region25
    $region24: #{tpu_custom_call.1} parent=1 // pred_region
      %127 = sst [smem:[#allocation10]] [#allocation21]
      %128 = sst [smem:[#allocation11]] [#allocation20]
    $region25: #{tpu_custom_call.1} parent=1 // pred_fallthru
      _
    %130 = shalt.err (0)
    %s132 = sshll.u32 %s123, 4
    %s133 = int_to_ptr.vmem [resolvable:$true] %s132
    %135 = dma.hbm_to_vmem [thread:$0]  %s122, 16, %s133, %s124
    %s136 = sadd.s32 %s12, 6
    %s137 = sld [smem:[#allocation5 + %s136]]
    %p138 = scmp.lt.s32.totalorder %s137, 63
    %s139 = scalar_select %p138, %s137, 63
    %p140 = scmp.gt.s32.totalorder %s139, 0
    %s141 = scalar_select %p140, %s139, 0
    %s142 = smul.addr %s141, 16
    %s143 = scalar_lea.hbm %s1, %s142
    %s144 = scalar_lea.vmem [#allocation2], 6
    %s145 = scalar_lea.sflag [#allocation3], 6
    // Predicated region
    $region26: #{tpu_custom_call.1} parent=1 // pred_check
      _
    $region27: #{tpu_custom_call.1} parent=1 // pred_check_branch
      %147 = sbr.rel target = $region29
    $region28: #{tpu_custom_call.1} parent=1 // pred_region
      %148 = sst [smem:[#allocation10]] [#allocation23]
      %149 = sst [smem:[#allocation11]] [#allocation22]
    $region29: #{tpu_custom_call.1} parent=1 // pred_fallthru
      _
    %151 = shalt.err (0)
    %s153 = sshll.u32 %s144, 4
    %s154 = int_to_ptr.vmem [resolvable:$true] %s153
    %156 = dma.hbm_to_vmem [thread:$0]  %s143, 16, %s154, %s145
    %s157 = sadd.s32 %s12, 7
    %s158 = sld [smem:[#allocation5 + %s157]]
    %p159 = scmp.lt.s32.totalorder %s158, 63
    %s160 = scalar_select %p159, %s158, 63
    %p161 = scmp.gt.s32.totalorder %s160, 0
    %s162 = scalar_select %p161, %s160, 0
    %s163 = smul.addr %s162, 16
    %s164 = scalar_lea.hbm %s1, %s163
    %s165 = scalar_lea.vmem [#allocation2], 7
    %s166 = scalar_lea.sflag [#allocation3], 7
    // Predicated region
    $region30: #{tpu_custom_call.1} parent=1 // pred_check
      _
    $region31: #{tpu_custom_call.1} parent=1 // pred_check_branch
      %168 = sbr.rel target = $region33
    $region32: #{tpu_custom_call.1} parent=1 // pred_region
      %169 = sst [smem:[#allocation10]] [#allocation25]
      %170 = sst [smem:[#allocation11]] [#allocation24]
    $region33: #{tpu_custom_call.1} parent=1 // pred_fallthru
      _
    %172 = shalt.err (0)
    %s174 = sshll.u32 %s165, 4
    %s175 = int_to_ptr.vmem [resolvable:$true] %s174
    %177 = dma.hbm_to_vmem [thread:$0]  %s164, 16, %s175, %s166
    loop: start=0, step=1, limit=24
    $region34: #{tpu_custom_call.1} parent=1 // loop_pre_header
      _
    $region35: #{tpu_custom_call.1} parent=1 // loop_header
      %s179 = sphi 0, %s183
      %p180 = scmp.ge.s32.totalorder %s179, 24
    $region36: #{tpu_custom_call.1} parent=1 // loop_header_branch
      %182 = sbr.rel (%p180) target = $region40
    $region37: #{tpu_custom_call.1} parent=1 // loop_body
      %s184 = sand.u32 %s179, 7
      %s185 = scalar_lea.sflag [#allocation3], %s184
      %s186 = smul.u32 1, 1
      %s187 = sshll.u32 %s186, 4
      %188 = dma.done %s185, %s187
      %s189 = sadd.s32 %s179, 8
      %s190 = sadd.s32 %s12, %s189
      %s191 = sld [smem:[#allocation5 + %s190]]
      %p192 = scmp.lt.s32.totalorder %s191, 63
      %s193 = scalar_select %p192, %s191, 63
      %p194 = scmp.gt.s32.totalorder %s193, 0
      %s195 = scalar_select %p194, %s193, 0
      %s196 = sand.u32 %s189, 7
      %s197 = smul.addr %s195, 16
      %s198 = scalar_lea.hbm %s1, %s197
      %s199 = scalar_lea.vmem [#allocation2], %s189
      %s200 = scalar_lea.sflag [#allocation3], %s196
      // Predicated region
      $region41: #{tpu_custom_call.1} parent=37 // pred_check
        _
      $region42: #{tpu_custom_call.1} parent=37 // pred_check_branch
        %202 = sbr.rel target = $region44
      $region43: #{tpu_custom_call.1} parent=37 // pred_region
        %203 = sst [smem:[#allocation10]] [#allocation27]
        %204 = sst [smem:[#allocation11]] [#allocation26]
      $region44: #{tpu_custom_call.1} parent=37 // pred_fallthru
        _
      %206 = shalt.err (0)
      %s208 = sshll.u32 %s199, 4
      %s209 = int_to_ptr.vmem [resolvable:$true] %s208
      %211 = dma.hbm_to_vmem [thread:$0]  %s198, 16, %s209, %s200
    $region38: #{tpu_custom_call.1} parent=1 // loop_footer
      %s183 = sadd.s32 1, %s179
    $region39: #{tpu_custom_call.1} parent=1 // loop_footer_branch
      %178 = sbr.rel target = $region35
    $region40: #{tpu_custom_call.1} parent=1 // loop_exit
      _
    loop: start=0, step=1, limit=8
    $region45: #{tpu_custom_call.1} parent=1 // loop_pre_header
      _
    $region46: #{tpu_custom_call.1} parent=1 // loop_header
      %s213 = sphi 0, %s217
      %p214 = scmp.ge.s32.totalorder %s213, 8
    $region47: #{tpu_custom_call.1} parent=1 // loop_header_branch
      %216 = sbr.rel (%p214) target = $region51
    $region48: #{tpu_custom_call.1} parent=1 // loop_body
      %s218 = sadd.s32 %s213, 24
      %s219 = sand.u32 %s218, 7
      %s220 = scalar_lea.sflag [#allocation3], %s219
      %s221 = smul.u32 1, 1
      %s222 = sshll.u32 %s221, 4
      %223 = dma.done %s220, %s222
    $region49: #{tpu_custom_call.1} parent=1 // loop_footer
      %s217 = sadd.s32 1, %s213
    $region50: #{tpu_custom_call.1} parent=1 // loop_footer_branch
      %212 = sbr.rel target = $region46
    $region51: #{tpu_custom_call.1} parent=1 // loop_exit
      _
    %v224 = vld [vmem:[#allocation2] sm:$0xff]
    %v225 = vld [vmem:[#allocation2 + $0x8] sm:$0xff]
    %v226 = vld [vmem:[#allocation2 + $0x10] sm:$0xff]
    %v227 = vld [vmem:[#allocation2 + $0x18] sm:$0xff]
    %v228 = vmul.f32 %v224, 11.313708
    %v229 = vmul.f32 %v225, 11.313708
    %v230 = vmul.f32 %v226, 11.313708
    %v231 = vmul.f32 %v227, 11.313708
    %232 = vst [vmem:[#allocation6] sm:$0xff] %v228
    %233 = vst [vmem:[#allocation6 + $0x8] sm:$0xff] %v229
    %234 = vst [vmem:[#allocation6 + $0x10] sm:$0xff] %v230
    %235 = vst [vmem:[#allocation6 + $0x18] sm:$0xff] %v231
    // Predicated region
    $region52: #{tpu_custom_call.1} parent=1 // pred_check
      _
    $region53: #{tpu_custom_call.1} parent=1 // pred_check_branch
      %237 = sbr.rel (0) target = $region55
    $region54: #{tpu_custom_call.1} parent=1 // pred_region
      %s239 = ssub.s32 512, 512
      %240 = vsyncadd [#allocation7], %s239
      %s241 = sshll.u32 [#allocation6], 4
      %s242 = int_to_ptr.vmem [resolvable:$true] %s241
      %247 = dma.vmem_to_hbm [thread:$0]  %s242, 512, %s2, [#allocation7], 128, 128, 8
    $region55: #{tpu_custom_call.1} parent=1 // pred_fallthru
      _
    // Predicated region
    $region56: #{tpu_custom_call.1} parent=1 // pred_check
      _
    $region57: #{tpu_custom_call.1} parent=1 // pred_check_branch
      %249 = sbr.rel (0) target = $region59
    $region58: #{tpu_custom_call.1} parent=1 // pred_region
      %250 = dma.done [#allocation7], 512
    $region59: #{tpu_custom_call.1} parent=1 // pred_fallthru
      _
    %251 = vsyncpa [#allocation7], 1
  %252 = vsyncmov [#allocation3]
  %s253 = vpop.sfrf %252
  %p254 = scmp.eq.s32.totalorder %s253, 0
  %p255 = pneg %p254
  %257 = shalt.err (%p255)
  %s258 = scalar_lea.sflag [#allocation3], 1
  %259 = vsyncmov %s258
  %s260 = vpop.sfrf %259
  %p261 = scmp.eq.s32.totalorder %s260, 0
  %p262 = pneg %p261
  %264 = shalt.err (%p262)
  %s265 = scalar_lea.sflag [#allocation3], 2
  %266 = vsyncmov %s265
  %s267 = vpop.sfrf %266
  %p268 = scmp.eq.s32.totalorder %s267, 0
  %p269 = pneg %p268
  %271 = shalt.err (%p269)
  %s272 = scalar_lea.sflag [#allocation3], 3
  %273 = vsyncmov %s272
  %s274 = vpop.sfrf %273
  %p275 = scmp.eq.s32.totalorder %s274, 0
  %p276 = pneg %p275
  %278 = shalt.err (%p276)
  %s279 = scalar_lea.sflag [#allocation3], 4
  %280 = vsyncmov %s279
  %s281 = vpop.sfrf %280
  %p282 = scmp.eq.s32.totalorder %s281, 0
  %p283 = pneg %p282
  %285 = shalt.err (%p283)
  %s286 = scalar_lea.sflag [#allocation3], 5
  %287 = vsyncmov %s286
  %s288 = vpop.sfrf %287
  %p289 = scmp.eq.s32.totalorder %s288, 0
  %p290 = pneg %p289
  %292 = shalt.err (%p290)
  %s293 = scalar_lea.sflag [#allocation3], 6
  %294 = vsyncmov %s293
  %s295 = vpop.sfrf %294
  %p296 = scmp.eq.s32.totalorder %s295, 0
  %p297 = pneg %p296
  %299 = shalt.err (%p297)
  %s300 = scalar_lea.sflag [#allocation3], 7
  %301 = vsyncmov %s300
  %s302 = vpop.sfrf %301
  %p303 = scmp.eq.s32.totalorder %s302, 0
  %p304 = pneg %p303
  %306 = shalt.err (%p304)

</llo_original>
